<compile_context>
chip_gen: v6e
topology: v6e:2x2x1
jax: 0.10.0
libtpu: 0.0.40
codegen_flags: <defaults>
</compile_context>

<pallas_src>
import functools

import jax
import jax.numpy as jnp
from jax.experimental import pallas as pl
from jax.experimental.pallas import tpu as pltpu


# --------------------------------------------------------------------------- #
# Fused kernel: all residual blocks on one (C, TG) activation tile            #
# --------------------------------------------------------------------------- #
def _fused_blocks_kernel(x_ref, w1_ref, b1_ref, w2_ref, b2_ref, out_ref,
                         *, n_blocks):
    """out = block_{n-1}( ... block_0(x) ... ) on one lane-dense tile.

    x_ref:   (C, TG)  f32 activation tile (points/batch on the lane axis)
    w1_ref:  (n_blocks, H, C) bf16  BN-folded net1 conv weights
    b1_ref:  (n_blocks, H, 1) f32   BN-folded net1 biases
    w2_ref:  (n_blocks, C, H) bf16  BN-folded net2 conv weights
    b2_ref:  (n_blocks, C, 1) f32   BN-folded net2 biases
    out_ref: (C, TG)  f32
    """
    x = x_ref[...].astype(jnp.float32)                       # residual stream, f32

    for blk in range(n_blocks):                               # static unroll
        # net1: 1x1 conv on the MXU (bf16 in, f32 acc) + folded BN bias + ReLU
        h = jnp.dot(w1_ref[blk], x.astype(jnp.bfloat16),
                    preferred_element_type=jnp.float32)       # (H, TG) f32
        h = jnp.maximum(h + b1_ref[blk], 0.0)

        # net2: 1x1 conv + folded BN bias
        y = jnp.dot(w2_ref[blk], h.astype(jnp.bfloat16),
                    preferred_element_type=jnp.float32)       # (C, TG) f32
        y = y + b2_ref[blk]

        # residual + final ReLU, kept in f32 across blocks
        x = jnp.maximum(y + x, 0.0)

    out_ref[...] = x.astype(out_ref.dtype)


def _pick_point_tile(n_pad):
    """Largest lane-dense tile dividing n_pad, preferring >=2 grid steps."""
    for t in (1024, 512, 256, 128):
        if n_pad % t == 0 and n_pad // t >= 2:
            return t
    for t in (1024, 512, 256, 128):
        if n_pad % t == 0:
            return t
    return n_pad


def _vmem_limit_bytes():
    """Generation-aware VMEM limit with headroom below physical capacity."""
    cap = 64 << 20  # conservative default (v7x per-TC physical VMEM)
    try:
        info = pltpu.get_tpu_info()
        cap = getattr(info, "vmem_capacity_bytes", cap) or cap
    except Exception:
        pass
    return int(min(cap * 3 // 4, 100 << 20))


# --------------------------------------------------------------------------- #
# BN folding + PosExtraction wrapper                                          #
# --------------------------------------------------------------------------- #
def fold_conv_bn(w, b, gamma, beta, mean, var, eps=1e-5):
    """Fold an inference-mode BatchNorm1d into the preceding 1x1 Conv1d.

    w: (O, I), b: (O,), BN params all (O,).  Returns (O, I) weight, (O, 1) bias.
    """
    scale = gamma / jnp.sqrt(var + eps)
    w_eff = w * scale[:, None]
    b_eff = scale * b + beta - scale * mean
    return w_eff, b_eff[:, None]


def pos_extraction(x, block_params):
    """PosExtraction.forward with all blocks fused into one pallas_call.

    x: (B, C, G); block_params: list of dicts with BN-folded w1/b1/w2/b2.
    """
    B, C, G = x.shape
    n_blocks = len(block_params)
    H = block_params[0]["w1"].shape[0]

    # Stack per-block params; weights to bf16 (MXU inputs), biases stay f32.
    w1s = jnp.stack([p["w1"] for p in block_params]).astype(jnp.bfloat16)
    b1s = jnp.stack([p["b1"] for p in block_params]).astype(jnp.float32)
    w2s = jnp.stack([p["w2"] for p in block_params]).astype(jnp.bfloat16)
    b2s = jnp.stack([p["b2"] for p in block_params]).astype(jnp.float32)

    # 1x1 convs treat every (batch, point) independently: flatten B*G onto the
    # lane axis once, so each grid step feeds the MXU a wide RHS.
    n = B * G
    x_flat = jnp.transpose(x, (1, 0, 2)).reshape(C, n).astype(jnp.float32)
    n_pad = ((n + 127) // 128) * 128
    if n_pad != n:
        x_flat = jnp.pad(x_flat, ((0, 0), (0, n_pad - n)))

    tg = _pick_point_tile(n_pad)
    grid = (n_pad // tg,)

    out_flat = pl.pallas_call(
        functools.partial(_fused_blocks_kernel, n_blocks=n_blocks),
        out_shape=jax.ShapeDtypeStruct((C, n_pad), jnp.float32),
        grid=grid,
        in_specs=[
            pl.BlockSpec((C, tg), lambda g: (0, g)),               # activation tile
            pl.BlockSpec((n_blocks, H, C), lambda g: (0, 0, 0)),   # resident weights
            pl.BlockSpec((n_blocks, H, 1), lambda g: (0, 0, 0)),
            pl.BlockSpec((n_blocks, C, H), lambda g: (0, 0, 0)),
            pl.BlockSpec((n_blocks, C, 1), lambda g: (0, 0, 0)),
        ],
        out_specs=pl.BlockSpec((C, tg), lambda g: (0, g)),
        input_output_aliases={0: 0},                               # reuse activation HBM
        compiler_params=pltpu.CompilerParams(
            dimension_semantics=("parallel",),
            vmem_limit_bytes=_vmem_limit_bytes(),
        ),
    )(x_flat, w1s, b1s, w2s, b2s)

    out_flat = out_flat[:, :n]
    return out_flat.reshape(C, B, G).transpose(1, 0, 2).astype(x.dtype)


# --------------------------------------------------------------------------- #
# Pure-JAX reference (f32 everywhere) for a correctness sanity check          #
# --------------------------------------------------------------------------- #
def _ref_block(x, w1, b1, w2, b2):
    h = jnp.maximum(jnp.einsum("hc,bcg->bhg", w1, x) + b1[None, :, :], 0.0)
    y = jnp.einsum("ch,bhg->bcg", w2, h) + b2[None, :, :]
    return jnp.maximum(y + x, 0.0)


def _ref_pos_extraction(x, block_params):
    for p in block_params:
        x = _ref_block(x, p["w1"], p["b1"], p["w2"], p["b2"])
    return x


if __name__ == "__main__":
    key = jax.random.PRNGKey(0)

    # input[b, d, g] as in the PyTorch module
    B, C, G = 2, 32, 128          # batch, channels, points (grouped anchors)
    blocks = 2
    res_expansion = 1.0
    H = int(C * res_expansion)

    # Per-block params: Conv1d weights/biases random, BatchNorm1d at default
    # init (gamma=1, beta=0, mean=0, var=1), folded into the conv.
    block_params = []
    for _ in range(blocks):
        key, k1, k2, k3, k4 = jax.random.split(key, 5)
        w1 = 0.1 * jax.random.normal(k1, (H, C), dtype=jnp.float32)
        b1 = 0.1 * jax.random.normal(k2, (H,), dtype=jnp.float32)
        w2 = 0.1 * jax.random.normal(k3, (C, H), dtype=jnp.float32)
        b2 = 0.1 * jax.random.normal(k4, (C,), dtype=jnp.float32)

        g1, be1 = jnp.ones((H,), jnp.float32), jnp.zeros((H,), jnp.float32)
        m1, v1 = jnp.zeros((H,), jnp.float32), jnp.ones((H,), jnp.float32)
        g2, be2 = jnp.ones((C,), jnp.float32), jnp.zeros((C,), jnp.float32)
        m2, v2 = jnp.zeros((C,), jnp.float32), jnp.ones((C,), jnp.float32)

        w1f, b1f = fold_conv_bn(w1, b1, g1, be1, m1, v1)
        w2f, b2f = fold_conv_bn(w2, b2, g2, be2, m2, v2)
        block_params.append({"w1": w1f, "b1": b1f, "w2": w2f, "b2": b2f})

    key, kx = jax.random.split(key)
    x = jax.random.normal(kx, (B, C, G), dtype=jnp.float32)

    fn = jax.jit(pos_extraction)
    out = fn(x, block_params)
    jax.block_until_ready(out)

    assert out.shape == (B, C, G)
    assert bool(jnp.all(jnp.isfinite(out)))

    # bf16 MXU inputs vs f32 reference -> loosened tolerance.
    ref = _ref_pos_extraction(x, block_params)
    assert bool(jnp.allclose(out, ref, atol=5e-2, rtol=5e-2))

    print("KERNEL_OK")
</pallas_src>

<mosaic_0001>
module attributes {stable_mosaic.version = 11 : i64} {
  func.func @_fused_blocks_kernel(%arg0: i32, %arg1: memref<32x128xf32, #tpu.memory_space<vmem>>, %arg2: memref<2x32x32xbf16, #tpu.memory_space<vmem>>, %arg3: memref<2x32x1xf32, #tpu.memory_space<vmem>>, %arg4: memref<2x32x32xbf16, #tpu.memory_space<vmem>>, %arg5: memref<2x32x1xf32, #tpu.memory_space<vmem>>, %arg6: memref<32x128xf32, #tpu.memory_space<vmem>>) attributes {dimension_semantics = [#tpu.dimension_semantics<parallel>], iteration_bounds = array<i64: 2>, scalar_prefetch = 0 : i64, scratch_operands = 0 : i64, tpu.core_type = #tpu.core_type<tc>, window_params = [{transform_indices = @transform_0, window_bounds = array<i64: 32, 128>}, {pipeline_mode = #tpu.pipeline_mode<synchronous>, transform_indices = @transform_1, window_bounds = array<i64: 2, 32, 32>}, {pipeline_mode = #tpu.pipeline_mode<synchronous>, transform_indices = @transform_2, window_bounds = array<i64: 2, 32, 1>}, {pipeline_mode = #tpu.pipeline_mode<synchronous>, transform_indices = @transform_3, window_bounds = array<i64: 2, 32, 32>}, {pipeline_mode = #tpu.pipeline_mode<synchronous>, transform_indices = @transform_4, window_bounds = array<i64: 2, 32, 1>}, {transform_indices = @transform_5, window_bounds = array<i64: 32, 128>}]} {
    %c0 = arith.constant 0 : index
    %c0_0 = arith.constant 0 : index
    %0 = vector.load %arg1[%c0, %c0_0] : memref<32x128xf32, #tpu.memory_space<vmem>>, vector<32x128xf32>
    %c0_1 = arith.constant 0 : index
    %c0_2 = arith.constant 0 : index
    %c0_3 = arith.constant 0 : index
    %1 = vector.load %arg2[%c0_1, %c0_2, %c0_3] : memref<2x32x32xbf16, #tpu.memory_space<vmem>>, vector<1x32x32xbf16>
    %2 = vector.shape_cast %1 : vector<1x32x32xbf16> to vector<32x32xbf16>
    %3 = arith.truncf %0 : vector<32x128xf32> to vector<32x128xbf16>
    %cst = arith.constant dense<0.000000e+00> : vector<32x128xf32>
    %4 = tpu.matmul %2, %3, %cst {dimension_numbers = #tpu.dot_dimension_numbers<[1], [0], [0], [1], [0, 0, 1, 1], [], []>} : vector<32x32xbf16>, vector<32x128xbf16>, vector<32x128xf32> -> vector<32x128xf32>
    %c0_4 = arith.constant 0 : index
    %c0_5 = arith.constant 0 : index
    %c0_6 = arith.constant 0 : index
    %5 = vector.load %arg3[%c0_4, %c0_5, %c0_6] : memref<2x32x1xf32, #tpu.memory_space<vmem>>, vector<1x32x1xf32>
    %6 = vector.shape_cast %5 : vector<1x32x1xf32> to vector<32x1xf32>
    %7 = vector.broadcast %6 : vector<32x1xf32> to vector<32x128xf32>
    %8 = arith.addf %4, %7 : vector<32x128xf32>
    %cst_7 = arith.constant 0.000000e+00 : f32
    %9 = vector.broadcast %cst_7 : f32 to vector<32x128xf32>
    %10 = arith.maximumf %8, %9 : vector<32x128xf32>
    %c0_8 = arith.constant 0 : index
    %c0_9 = arith.constant 0 : index
    %c0_10 = arith.constant 0 : index
    %11 = vector.load %arg4[%c0_8, %c0_9, %c0_10] : memref<2x32x32xbf16, #tpu.memory_space<vmem>>, vector<1x32x32xbf16>
    %12 = vector.shape_cast %11 : vector<1x32x32xbf16> to vector<32x32xbf16>
    %13 = arith.truncf %10 : vector<32x128xf32> to vector<32x128xbf16>
    %cst_11 = arith.constant dense<0.000000e+00> : vector<32x128xf32>
    %14 = tpu.matmul %12, %13, %cst_11 {dimension_numbers = #tpu.dot_dimension_numbers<[1], [0], [0], [1], [0, 0, 1, 1], [], []>} : vector<32x32xbf16>, vector<32x128xbf16>, vector<32x128xf32> -> vector<32x128xf32>
    %c0_12 = arith.constant 0 : index
    %c0_13 = arith.constant 0 : index
    %c0_14 = arith.constant 0 : index
    %15 = vector.load %arg5[%c0_12, %c0_13, %c0_14] : memref<2x32x1xf32, #tpu.memory_space<vmem>>, vector<1x32x1xf32>
    %16 = vector.shape_cast %15 : vector<1x32x1xf32> to vector<32x1xf32>
    %17 = vector.broadcast %16 : vector<32x1xf32> to vector<32x128xf32>
    %18 = arith.addf %14, %17 : vector<32x128xf32>
    %19 = arith.addf %18, %0 : vector<32x128xf32>
    %cst_15 = arith.constant 0.000000e+00 : f32
    %20 = vector.broadcast %cst_15 : f32 to vector<32x128xf32>
    %21 = arith.maximumf %19, %20 : vector<32x128xf32>
    %c1 = arith.constant 1 : index
    %c0_16 = arith.constant 0 : index
    %c0_17 = arith.constant 0 : index
    %22 = vector.load %arg2[%c1, %c0_16, %c0_17] : memref<2x32x32xbf16, #tpu.memory_space<vmem>>, vector<1x32x32xbf16>
    %23 = vector.shape_cast %22 : vector<1x32x32xbf16> to vector<32x32xbf16>
    %24 = arith.truncf %21 : vector<32x128xf32> to vector<32x128xbf16>
    %cst_18 = arith.constant dense<0.000000e+00> : vector<32x128xf32>
    %25 = tpu.matmul %23, %24, %cst_18 {dimension_numbers = #tpu.dot_dimension_numbers<[1], [0], [0], [1], [0, 0, 1, 1], [], []>} : vector<32x32xbf16>, vector<32x128xbf16>, vector<32x128xf32> -> vector<32x128xf32>
    %c1_19 = arith.constant 1 : index
    %c0_20 = arith.constant 0 : index
    %c0_21 = arith.constant 0 : index
    %26 = vector.load %arg3[%c1_19, %c0_20, %c0_21] : memref<2x32x1xf32, #tpu.memory_space<vmem>>, vector<1x32x1xf32>
    %27 = vector.shape_cast %26 : vector<1x32x1xf32> to vector<32x1xf32>
    %28 = vector.broadcast %27 : vector<32x1xf32> to vector<32x128xf32>
    %29 = arith.addf %25, %28 : vector<32x128xf32>
    %cst_22 = arith.constant 0.000000e+00 : f32
    %30 = vector.broadcast %cst_22 : f32 to vector<32x128xf32>
    %31 = arith.maximumf %29, %30 : vector<32x128xf32>
    %c1_23 = arith.constant 1 : index
    %c0_24 = arith.constant 0 : index
    %c0_25 = arith.constant 0 : index
    %32 = vector.load %arg4[%c1_23, %c0_24, %c0_25] : memref<2x32x32xbf16, #tpu.memory_space<vmem>>, vector<1x32x32xbf16>
    %33 = vector.shape_cast %32 : vector<1x32x32xbf16> to vector<32x32xbf16>
    %34 = arith.truncf %31 : vector<32x128xf32> to vector<32x128xbf16>
    %cst_26 = arith.constant dense<0.000000e+00> : vector<32x128xf32>
    %35 = tpu.matmul %33, %34, %cst_26 {dimension_numbers = #tpu.dot_dimension_numbers<[1], [0], [0], [1], [0, 0, 1, 1], [], []>} : vector<32x32xbf16>, vector<32x128xbf16>, vector<32x128xf32> -> vector<32x128xf32>
    %c1_27 = arith.constant 1 : index
    %c0_28 = arith.constant 0 : index
    %c0_29 = arith.constant 0 : index
    %36 = vector.load %arg5[%c1_27, %c0_28, %c0_29] : memref<2x32x1xf32, #tpu.memory_space<vmem>>, vector<1x32x1xf32>
    %37 = vector.shape_cast %36 : vector<1x32x1xf32> to vector<32x1xf32>
    %38 = vector.broadcast %37 : vector<32x1xf32> to vector<32x128xf32>
    %39 = arith.addf %35, %38 : vector<32x128xf32>
    %40 = arith.addf %39, %21 : vector<32x128xf32>
    %cst_30 = arith.constant 0.000000e+00 : f32
    %41 = vector.broadcast %cst_30 : f32 to vector<32x128xf32>
    %42 = arith.maximumf %40, %41 : vector<32x128xf32>
    %c0_31 = arith.constant 0 : index
    %c0_32 = arith.constant 0 : index
    %43 = vector.load %arg6[%c0_31, %c0_32] : memref<32x128xf32, #tpu.memory_space<vmem>>, vector<32x128xf32>
    tpu.vector_store %arg6[%c0_31, %c0_32], %42 {strides = array<i32>} : memref<32x128xf32, #tpu.memory_space<vmem>>, vector<32x128xf32>,
    return
  }
  func.func @transform_0(%arg0: i32) -> (i32, i32) {
    %c0_i32 = arith.constant 0 : i32
    %c0_i32_0 = arith.constant 0 : i32
    return %c0_i32, %arg0 : i32, i32
  }
  func.func @transform_1(%arg0: i32) -> (i32, i32, i32) {
    %c0_i32 = arith.constant 0 : i32
    %c0_i32_0 = arith.constant 0 : i32
    %c0_i32_1 = arith.constant 0 : i32
    %c0_i32_2 = arith.constant 0 : i32
    return %c0_i32, %c0_i32_0, %c0_i32_1 : i32, i32, i32
  }
  func.func @transform_2(%arg0: i32) -> (i32, i32, i32) {
    %c0_i32 = arith.constant 0 : i32
    %c0_i32_0 = arith.constant 0 : i32
    %c0_i32_1 = arith.constant 0 : i32
    %c0_i32_2 = arith.constant 0 : i32
    return %c0_i32, %c0_i32_0, %c0_i32_1 : i32, i32, i32
  }
  func.func @transform_3(%arg0: i32) -> (i32, i32, i32) {
    %c0_i32 = arith.constant 0 : i32
    %c0_i32_0 = arith.constant 0 : i32
    %c0_i32_1 = arith.constant 0 : i32
    %c0_i32_2 = arith.constant 0 : i32
    return %c0_i32, %c0_i32_0, %c0_i32_1 : i32, i32, i32
  }
  func.func @transform_4(%arg0: i32) -> (i32, i32, i32) {
    %c0_i32 = arith.constant 0 : i32
    %c0_i32_0 = arith.constant 0 : i32
    %c0_i32_1 = arith.constant 0 : i32
    %c0_i32_2 = arith.constant 0 : i32
    return %c0_i32, %c0_i32_0, %c0_i32_1 : i32, i32, i32
  }
  func.func @transform_5(%arg0: i32) -> (i32, i32) {
    %c0_i32 = arith.constant 0 : i32
    %c0_i32_0 = arith.constant 0 : i32
    return %c0_i32, %arg0 : i32, i32
  }
}

</mosaic_0001>

<llo_original>
// kernel: pos_extraction.1
$region0: #{pos_extraction.1}
  #allocation0 [shape = 'u32[]', space=smem, size = 0x4, offset = 0x4, fixed_abs, tag = 'smem constant byte address 0x4 - core index']
  #allocation1 [shape = 'u32[144,128]{1,0:T(1,128)}', space=vmem, size = 0x12000, scoped, tag = 'internal scratch']
  %s0 = inlined_call_operand.vmem [shape: f32[32,256], index: 0, kind: input, shape index: {}, may-alias: {0,5}]
  %s1 = inlined_call_operand.vmem [shape: bf16[2,32,32], index: 1, kind: input, shape index: {}]
  %s2 = inlined_call_operand.vmem [shape: f32[2,32,1], index: 2, kind: input, shape index: {}]
  %s3 = inlined_call_operand.vmem [shape: bf16[2,32,32], index: 3, kind: input, shape index: {}]
  %s4 = inlined_call_operand.vmem [shape: f32[2,32,1], index: 4, kind: input, shape index: {}]
  %s5 = inlined_call_operand.vmem [shape: f32[32,256], index: 5, kind: output, shape index: {}, may-alias: {0,5}]
  %s6 = sld [smem:[#allocation0]]
  $region125: #{pos_extraction.1} parent=0
    _
  %s8 = ssub.s32 1, %s6
  %s9 = scalar_select 0, %s8, %s6
  $region1: #{pos_extraction.1} parent=0
    #allocation2 [shape = 'u8[32768]{0}', space=vmem, size = 0x8000, scoped, tag = 'input window, operand 0']
    #allocation3 [shape = 'u8[32768]{0}', space=vmem, size = 0x8000, scoped, tag = 'output window, operand 0']
    loop: start=0, step=1, limit=4
    $region2: #{pos_extraction.1} parent=1 // loop_pre_header
      _
    $region3: #{pos_extraction.1} parent=1 // loop_header
      %s11 = sphi 0, %s15
      %p12 = scmp.ge.s32.totalorder %s11, 4
      %s21 = sphi 0, %s23
      %s24 = sphi 0, %s21
      %s25 = sphi 0, %s24
      %s41 = sphi 0, %s25
      %s45 = sphi 0, %s45
      %s47 = sphi 0, %s45
      %s48 = sphi 0, %s47
      %s62 = sphi 0, %s48
      %s66 = sphi 0, %s66
      %s68 = sphi 0, %s66
      %s69 = sphi 0, %s68
      %s83 = sphi 0, %s69
      %s87 = sphi 0, %s87
      %s89 = sphi 0, %s87
      %s90 = sphi 0, %s89
      %s104 = sphi 0, %s90
      %s108 = sphi 0, %s108
      %s110 = sphi 0, %s108
      %s111 = sphi 0, %s110
      %s125 = sphi 0, %s111
      %s131 = sphi 0, %s133
      %s134 = sphi 0, %s131
      %s135 = sphi 0, %s134
      %s151 = sphi 0, %s135
    $region4: #{pos_extraction.1} parent=1 // loop_header_branch
      %14 = sbr.rel (%p12) target = $region8
    $region5: #{pos_extraction.1} parent=1 // loop_body
      %s16 = ssub.s32 %s11, 1
      %s17 = ssub.s32 %s11, 2
      %s18 = sadd.s32 %s11, 1
      %s19 = ssub.s32 %s11, %s18
      %p20 = scmp.eq.s32.totalorder %s19, 0
      %s22 = sadd.s32 %s21, 1
      %s23 = scalar_select %p20, %s21, %s22
      %p26 = pneg %p20
      %p27 = scmp.eq.s32.totalorder %s11, 1
      %p28 = por %p26, %p27
      %p29 = scmp.ne.s32.totalorder %s21, %s24
      %p30 = scmp.eq.s32.totalorder %s11, 0
      %p31 = por %p29, %p30
      %p32 = scmp.ne.s32.totalorder %s21, %s24
      %p33 = scmp.eq.s32.totalorder %s16, 1
      %p34 = por %p32, %p33
      %p35 = scmp.ne.s32.totalorder %s24, %s25
      %p36 = scmp.eq.s32.totalorder %s16, 0
      %p37 = por %p35, %p36
      %p38 = scmp.ne.s32.totalorder %s24, %s25
      %p39 = scmp.eq.s32.totalorder %s17, 1
      %p40 = por %p38, %p39
      %p42 = scmp.ne.s32.totalorder %s25, %s41
      %p43 = scmp.eq.s32.totalorder %s17, 0
      %p44 = por %p42, %p43
      %s46 = sadd.s32 %s45, 1
      %p49 = scmp.eq.s32.totalorder %s11, 1
      %p50 = scmp.ne.s32.totalorder %s45, %s47
      %p51 = scmp.eq.s32.totalorder %s11, 0
      %p52 = por %p50, %p51
      %p53 = scmp.ne.s32.totalorder %s45, %s47
      %p54 = scmp.eq.s32.totalorder %s16, 1
      %p55 = por %p53, %p54
      %p56 = scmp.ne.s32.totalorder %s47, %s48
      %p57 = scmp.eq.s32.totalorder %s16, 0
      %p58 = por %p56, %p57
      %p59 = scmp.ne.s32.totalorder %s47, %s48
      %p60 = scmp.eq.s32.totalorder %s17, 1
      %p61 = por %p59, %p60
      %p63 = scmp.ne.s32.totalorder %s48, %s62
      %p64 = scmp.eq.s32.totalorder %s17, 0
      %p65 = por %p63, %p64
      %s67 = sadd.s32 %s66, 1
      %p70 = scmp.eq.s32.totalorder %s11, 1
      %p71 = scmp.ne.s32.totalorder %s66, %s68
      %p72 = scmp.eq.s32.totalorder %s11, 0
      %p73 = por %p71, %p72
      %p74 = scmp.ne.s32.totalorder %s66, %s68
      %p75 = scmp.eq.s32.totalorder %s16, 1
      %p76 = por %p74, %p75
      %p77 = scmp.ne.s32.totalorder %s68, %s69
      %p78 = scmp.eq.s32.totalorder %s16, 0
      %p79 = por %p77, %p78
      %p80 = scmp.ne.s32.totalorder %s68, %s69
      %p81 = scmp.eq.s32.totalorder %s17, 1
      %p82 = por %p80, %p81
      %p84 = scmp.ne.s32.totalorder %s69, %s83
      %p85 = scmp.eq.s32.totalorder %s17, 0
      %p86 = por %p84, %p85
      %s88 = sadd.s32 %s87, 1
      %p91 = scmp.eq.s32.totalorder %s11, 1
      %p92 = scmp.ne.s32.totalorder %s87, %s89
      %p93 = scmp.eq.s32.totalorder %s11, 0
      %p94 = por %p92, %p93
      %p95 = scmp.ne.s32.totalorder %s87, %s89
      %p96 = scmp.eq.s32.totalorder %s16, 1
      %p97 = por %p95, %p96
      %p98 = scmp.ne.s32.totalorder %s89, %s90
      %p99 = scmp.eq.s32.totalorder %s16, 0
      %p100 = por %p98, %p99
      %p101 = scmp.ne.s32.totalorder %s89, %s90
      %p102 = scmp.eq.s32.totalorder %s17, 1
      %p103 = por %p101, %p102
      %p105 = scmp.ne.s32.totalorder %s90, %s104
      %p106 = scmp.eq.s32.totalorder %s17, 0
      %p107 = por %p105, %p106
      %s109 = sadd.s32 %s108, 1
      %p112 = scmp.eq.s32.totalorder %s11, 1
      %p113 = scmp.ne.s32.totalorder %s108, %s110
      %p114 = scmp.eq.s32.totalorder %s11, 0
      %p115 = por %p113, %p114
      %p116 = scmp.ne.s32.totalorder %s108, %s110
      %p117 = scmp.eq.s32.totalorder %s16, 1
      %p118 = por %p116, %p117
      %p119 = scmp.ne.s32.totalorder %s110, %s111
      %p120 = scmp.eq.s32.totalorder %s16, 0
      %p121 = por %p119, %p120
      %p122 = scmp.ne.s32.totalorder %s110, %s111
      %p123 = scmp.eq.s32.totalorder %s17, 1
      %p124 = por %p122, %p123
      %p126 = scmp.ne.s32.totalorder %s111, %s125
      %p127 = scmp.eq.s32.totalorder %s17, 0
      %p128 = por %p126, %p127
      %s129 = ssub.s32 %s11, %s18
      %p130 = scmp.eq.s32.totalorder %s129, 0
      %s132 = sadd.s32 %s131, 1
      %s133 = scalar_select %p130, %s131, %s132
      %p136 = pneg %p130
      %p137 = scmp.eq.s32.totalorder %s11, 1
      %p138 = por %p136, %p137
      %p139 = scmp.ne.s32.totalorder %s131, %s134
      %p140 = scmp.eq.s32.totalorder %s11, 0
      %p141 = por %p139, %p140
      %p142 = scmp.ne.s32.totalorder %s131, %s134
      %p143 = scmp.eq.s32.totalorder %s16, 1
      %p144 = por %p142, %p143
      %p145 = scmp.ne.s32.totalorder %s134, %s135
      %p146 = scmp.eq.s32.totalorder %s16, 0
      %p147 = por %p145, %p146
      %p148 = scmp.ne.s32.totalorder %s134, %s135
      %p149 = scmp.eq.s32.totalorder %s17, 1
      %p150 = por %p148, %p149
      %p152 = scmp.ne.s32.totalorder %s135, %s151
      %p153 = scmp.eq.s32.totalorder %s17, 0
      %p154 = por %p152, %p153
      %p155 = scmp.le.s32.totalorder 1, %s11
      %p156 = scmp.lt.s32.totalorder %s11, 3
      %p157 = pnand %p155, %p156
      %p158 = pneg %p157
      // Predicated region
      $region9: #{pos_extraction.1} parent=5 // pred_check
        _
      $region10: #{pos_extraction.1} parent=5 // pred_check_branch
        %160 = sbr.rel (%p157) target = $region12
      $region11: #{pos_extraction.1} parent=5 // pred_region
        %s161 = ssub.s32 %s11, 1
        // Predicated region
        $region13: #{pos_extraction.1} parent=11 // pred_check
          %p162 = pneg %p58
        $region14: #{pos_extraction.1} parent=11 // pred_check_branch
          %164 = sbr.rel (%p162) target = $region16
        $region15: #{pos_extraction.1} parent=11 // pred_region
          _
        $region16: #{pos_extraction.1} parent=11 // pred_fallthru
          _
        // Predicated region
        $region17: #{pos_extraction.1} parent=11 // pred_check
          %p165 = pneg %p79
        $region18: #{pos_extraction.1} parent=11 // pred_check_branch
          %167 = sbr.rel (%p165) target = $region20
        $region19: #{pos_extraction.1} parent=11 // pred_region
          _
        $region20: #{pos_extraction.1} parent=11 // pred_fallthru
          _
        // Predicated region
        $region21: #{pos_extraction.1} parent=11 // pred_check
          %p168 = pneg %p100
        $region22: #{pos_extraction.1} parent=11 // pred_check_branch
          %170 = sbr.rel (%p168) target = $region24
        $region23: #{pos_extraction.1} parent=11 // pred_region
          _
        $region24: #{pos_extraction.1} parent=11 // pred_fallthru
          _
        // Predicated region
        $region25: #{pos_extraction.1} parent=11 // pred_check
          %p171 = pneg %p121
        $region26: #{pos_extraction.1} parent=11 // pred_check_branch
          %173 = sbr.rel (%p171) target = $region28
        $region27: #{pos_extraction.1} parent=11 // pred_region
          _
        $region28: #{pos_extraction.1} parent=11 // pred_fallthru
          _
      $region12: #{pos_extraction.1} parent=5 // pred_fallthru
        _
      %p174 = scmp.lt.s32.totalorder %s11, 2
      // Predicated region
      $region29: #{pos_extraction.1} parent=5 // pred_check
        %p175 = pneg %p174
      $region30: #{pos_extraction.1} parent=5 // pred_check_branch
        %177 = sbr.rel (%p175) target = $region32
      $region31: #{pos_extraction.1} parent=5 // pred_region
        // Predicated region
        $region33: #{pos_extraction.1} parent=31 // pred_check
          %p178 = pneg %p31
        $region34: #{pos_extraction.1} parent=31 // pred_check_branch
          %180 = sbr.rel (%p178) target = $region36
        $region35: #{pos_extraction.1} parent=31 // pred_region
          %s181 = sand.u32 %s21, 1
          %s182 = sand.u32 %s21, 1
          %s183 = smul.addr %s182, 32
          %s184 = scalar_lea.vmem [#allocation2], %s183
          %s185 = smul.addr %s11, 8
          %s186 = scalar_lea.vmem %s0, %s185
          // Predicated region
          $region37: #{pos_extraction.1} parent=35 // pred_check
            _
          $region38: #{pos_extraction.1} parent=35 // pred_check_branch
            %188 = sbr.rel (0) target = $region40
          $region39: #{pos_extraction.1} parent=35 // pred_region
            // Predicated region
            $region41: #{pos_extraction.1} parent=39 // pred_check
              _
            $region42: #{pos_extraction.1} parent=39 // pred_check_branch
              %190 = sbr.rel (0) target = $region44
            $region43: #{pos_extraction.1} parent=39 // pred_region
              // Predicated region
              $region56: #{pos_extraction.1} parent=43 // pred_check
                _
              $region57: #{pos_extraction.1} parent=43 // pred_check_branch
                %212 = sbr.rel (0) target = $region59
              $region58: #{pos_extraction.1} parent=43 // pred_region
                loop: start=0, step=1, limit=1
                $region60: #{pos_extraction.1} parent=58 // loop_pre_header
                  _
                $region61: #{pos_extraction.1} parent=58 // loop_header
                  %s214 = sphi 0, %s218
                  %p215 = scmp.ge.s32.totalorder %s214, 1
                  %s219 = sphi %s186, %s186
                  %s220 = sphi %s184, %s184
                $region62: #{pos_extraction.1} parent=58 // loop_header_branch
                  %217 = sbr.rel (%p215) target = $region66
                $region63: #{pos_extraction.1} parent=58 // loop_body
                  %v221 = vld [vmem:[%s219] sm:$0xff]
                  %222 = vst [vmem:[%s220] sm:$0xff] %v221
                  %v223 = vld [vmem:[%s219 + $0x10] sm:$0xff]
                  %224 = vst [vmem:[%s220 + $0x8] sm:$0xff] %v223
                  %v225 = vld [vmem:[%s219 + $0x20] sm:$0xff]
                  %226 = vst [vmem:[%s220 + $0x10] sm:$0xff] %v225
                  %v227 = vld [vmem:[%s219 + $0x30] sm:$0xff]
                  %228 = vst [vmem:[%s220 + $0x18] sm:$0xff] %v227
                $region64: #{pos_extraction.1} parent=58 // loop_footer
                  %s218 = sadd.s32 1, %s214
                $region65: #{pos_extraction.1} parent=58 // loop_footer_branch
                  %213 = sbr.rel target = $region61
                $region66: #{pos_extraction.1} parent=58 // loop_exit
                  _
              $region59: #{pos_extraction.1} parent=43 // pred_fallthru
                _
              // Predicated region
              $region67: #{pos_extraction.1} parent=43 // pred_check
                _
              $region68: #{pos_extraction.1} parent=43 // pred_check_branch
                %230 = sbr.rel target = $region70
              $region69: #{pos_extraction.1} parent=43 // pred_region
                _
              $region70: #{pos_extraction.1} parent=43 // pred_fallthru
                _
            $region44: #{pos_extraction.1} parent=39 // pred_fallthru
              _
            // Predicated region
            $region45: #{pos_extraction.1} parent=39 // pred_check
              _
            $region46: #{pos_extraction.1} parent=39 // pred_check_branch
              %192 = sbr.rel target = $region48
            $region47: #{pos_extraction.1} parent=39 // pred_region
              %s194 = ssub.s32 256, 1
              loop: start=0, step=1, limit=1
              $region49: #{pos_extraction.1} parent=47 // loop_pre_header
                _
              $region50: #{pos_extraction.1} parent=47 // loop_header
                %s196 = sphi 0, %s200
                %p197 = scmp.ge.s32.totalorder %s196, 1
                %s201 = sphi %s186, %s186
                %s202 = sphi %s184, %s184
              $region51: #{pos_extraction.1} parent=47 // loop_header_branch
                %199 = sbr.rel (%p197) target = $region55
              $region52: #{pos_extraction.1} parent=47 // loop_body
                %v203 = vld [vmem:[%s201] sm:%s194]
                %204 = vst [vmem:[%s202] sm:%s194] %v203
                %v205 = vld [vmem:[%s201 + $0x10] sm:%s194]
                %206 = vst [vmem:[%s202 + $0x8] sm:%s194] %v205
                %v207 = vld [vmem:[%s201 + $0x20] sm:%s194]
                %208 = vst [vmem:[%s202 + $0x10] sm:%s194] %v207
                %v209 = vld [vmem:[%s201 + $0x30] sm:%s194]
                %210 = vst [vmem:[%s202 + $0x18] sm:%s194] %v209
              $region53: #{pos_extraction.1} parent=47 // loop_footer
                %s200 = sadd.s32 1, %s196
              $region54: #{pos_extraction.1} parent=47 // loop_footer_branch
                %195 = sbr.rel target = $region50
              $region55: #{pos_extraction.1} parent=47 // loop_exit
                _
            $region48: #{pos_extraction.1} parent=39 // pred_fallthru
              _
          $region40: #{pos_extraction.1} parent=35 // pred_fallthru
            _
          %231 = vnop
        $region36: #{pos_extraction.1} parent=31 // pred_fallthru
          _
      $region32: #{pos_extraction.1} parent=5 // pred_fallthru
        _
      %p232 = scmp.le.s32.totalorder 1, %s11
      %p233 = scmp.lt.s32.totalorder %s11, 3
      %p234 = pnand %p232, %p233
      %p235 = pneg %p234
      // Predicated region
      $region71: #{pos_extraction.1} parent=5 // pred_check
        _
      $region72: #{pos_extraction.1} parent=5 // pred_check_branch
        %237 = sbr.rel (%p234) target = $region74
      $region73: #{pos_extraction.1} parent=5 // pred_region
        %s238 = ssub.s32 %s11, 1
        %s239 = sand.u32 %s24, 1
        %s240 = sand.u32 %s24, 1
        %s241 = smul.addr %s240, 32
        %s242 = scalar_lea.vmem [#allocation2], %s241
        // Predicated region
        $region75: #{pos_extraction.1} parent=73 // pred_check
          %p243 = pneg %p37
        $region76: #{pos_extraction.1} parent=73 // pred_check_branch
          %245 = sbr.rel (%p243) target = $region78
        $region77: #{pos_extraction.1} parent=73 // pred_region
          _
        $region78: #{pos_extraction.1} parent=73 // pred_fallthru
          _
        %s246 = sand.u32 %s24, 1
        %s247 = sand.u32 %s24, 1
        %s248 = smul.addr %s247, 32
        %s249 = scalar_lea.vmem [#allocation2], %s248
        %p250 = pneg %p37
        %p251 = pneg %p34
        %p252 = pneg %p58
        %p253 = pneg %p55
        %p254 = pneg %p79
        %p255 = pneg %p76
        %p256 = pneg %p100
        %p257 = pneg %p97
        %p258 = pneg %p121
        %p259 = pneg %p118
        %p260 = pneg %p147
        %p261 = pneg %p144
        %s262 = sand.u32 %s134, 1
        %s263 = sand.u32 %s134, 1
        %s264 = smul.addr %s263, 32
        %s265 = scalar_lea.vmem [#allocation3], %s264
        %v267 = vld [vmem:[%s242] sm:$0xff]
        %v268 = vld [vmem:[%s242 + $0x8] sm:$0xff]
        %v269 = vld [vmem:[%s242 + $0x10] sm:$0xff]
        %v270 = vld [vmem:[%s242 + $0x18] sm:$0xff]
        %v271 = vld [vmem:[%s1] sm:$0xf]
        %v272 = vld [vmem:[%s1 + $0x4] sm:$0xf]
        %v273 = vld [vmem:[%s1 + $0x8] sm:$0xf]
        %v274 = vld [vmem:[%s1 + $0xc] sm:$0xf]
        %v275 = vpack.c.bf16 %v268, %v267
        %v276 = vpack.c.bf16 %v270, %v269
        %v277 = vld [vmem:[%s2] sm:$0xff]
        %v278 = vld [vmem:[%s2 + $0x8] sm:$0xff]
        %v279 = vld [vmem:[%s2 + $0x10] sm:$0xff]
        %v280 = vld [vmem:[%s2 + $0x18] sm:$0xff]
        %282 = vset.pattern.permute.xlu0 0
        %283 = vperm.xlu0 %282, %v277
        %v284 = vpop.permute.xlu0 %283
        %287 = vset.pattern.permute.xlu0 0
        %288 = vperm.xlu0 %287, %v278
        %v289 = vpop.permute.xlu0 %288
        %292 = vset.pattern.permute.xlu0 0
        %293 = vperm.xlu0 %292, %v279
        %v294 = vpop.permute.xlu0 %293
        %297 = vset.pattern.permute.xlu0 0
        %298 = vperm.xlu0 %297, %v280
        %v299 = vpop.permute.xlu0 %298
        %v305 = vunpack.c.l.b16 %v271
        %v306 = vunpack.c.l.b16 %v272
        %v307 = vunpack.c.l.b16 %v273
        %v308 = vunpack.c.l.b16 %v274
        %v309 = vpack.c.b16 %v306, %v305
        %v310 = vpack.c.b16 %v308, %v307
        %vm311 = vcmask 261120
        %v313 = vsel %vm311, %v309, 0
        %v316 = vsel %vm311, %v310, 0
        %318 = vmatprep.subr.bf16.mxu0 0
        %319 = vmatpush1.bf16.msra.mxu0 0
        %320 = vmatprep.subr.bf16.mxu0 0
        %321 = vmatpush1.bf16.msra.mxu0 0
        %322 = vmatprep.subr.bf16.mxu0 0
        %323 = vmatpush1.bf16.msra.mxu0 0
        %324 = vmatprep.subr.bf16.mxu0 0
        %325 = vmatpush1.bf16.msra.mxu0 0
        %326 = vmatprep.subr.bf16.mxu0 0
        %327 = vmatpush1.bf16.msra.mxu0 0
        %328 = vmatprep.subr.bf16.mxu0 0
        %329 = vmatpush1.bf16.msra.mxu0 0
        %330 = vmatprep.subr.bf16.mxu0 0
        %331 = vmatpush1.bf16.msra.mxu0 %v276
        %332 = vmatprep.subr.bf16.mxu0 0
        %333 = vmatpush1.bf16.msra.mxu0 %v275
        %334 = vmatprep.subr.bf16.mxu0 0
        %335 = vmatpush2.bf16.msra.mxu0 0
        %336 = vmatprep.subr.bf16.mxu0 0
        %337 = vmatpush2.bf16.msra.mxu0 0
        %338 = vmatprep.subr.bf16.mxu0 0
        %339 = vmatpush2.bf16.msra.mxu0 0
        %340 = vmatprep.subr.bf16.mxu0 0
        %341 = vmatpush2.bf16.msra.mxu0 0
        %342 = vmatprep.subr.bf16.mxu0 0
        %343 = vmatpush2.bf16.msra.mxu0 0
        %344 = vmatprep.subr.bf16.mxu0 0
        %345 = vmatpush2.bf16.msra.mxu0 0
        %346 = vmatprep.subr.bf16.mxu0 0
        %347 = vmatpush2.bf16.msra.mxu0 0
        %348 = vmatprep.subr.bf16.mxu0 0
        %349 = vmatpush2.bf16.msra.mxu0 0
        %350 = vmatprep.mubr.bf16.mxu0 0
        %351 = vmatmul.mubr.bf16.gmra.mxu0 %v313
        %v352 = vpop.f32.mrf.mxu0
        %v353 = vadd.f32 %v284, %v352
        %v354 = vpop.f32.mrf.mxu0
        %v355 = vpop.f32.mrf.mxu0
        %v356 = vadd.f32 %v289, %v355
        %v357 = vpop.f32.mrf.mxu0
        %358 = vmatprep.mubr.bf16.mxu0 0
        %359 = vmatmul.mubr.bf16.gmra.mxu0 %v316
        %v360 = vpop.f32.mrf.mxu0
        %v361 = vadd.f32 %v294, %v360
        %v362 = vpop.f32.mrf.mxu0
        %v363 = vpop.f32.mrf.mxu0
        %v364 = vadd.f32 %v299, %v363
        %v365 = vpop.f32.mrf.mxu0
        %366 = vdwg.mxu0
        %v367 = vmax.f32 %v353, 0.0
        %v368 = vmax.f32 %v356, 0.0
        %v369 = vmax.f32 %v361, 0.0
        %v370 = vmax.f32 %v364, 0.0
        %v371 = vld [vmem:[%s3] sm:$0xf]
        %v372 = vld [vmem:[%s3 + $0x4] sm:$0xf]
        %v373 = vld [vmem:[%s3 + $0x8] sm:$0xf]
        %v374 = vld [vmem:[%s3 + $0xc] sm:$0xf]
        %v375 = vpack.c.bf16 %v368, %v367
        %v376 = vpack.c.bf16 %v370, %v369
        %v377 = vld [vmem:[%s4] sm:$0xff]
        %v378 = vld [vmem:[%s4 + $0x8] sm:$0xff]
        %v379 = vld [vmem:[%s4 + $0x10] sm:$0xff]
        %v380 = vld [vmem:[%s4 + $0x18] sm:$0xff]
        %382 = vset.pattern.permute.xlu0 0
        %383 = vperm.xlu0 %382, %v377
        %v384 = vpop.permute.xlu0 %383
        %387 = vset.pattern.permute.xlu0 0
        %388 = vperm.xlu0 %387, %v378
        %v389 = vpop.permute.xlu0 %388
        %392 = vset.pattern.permute.xlu0 0
        %393 = vperm.xlu0 %392, %v379
        %v394 = vpop.permute.xlu0 %393
        %397 = vset.pattern.permute.xlu0 0
        %398 = vperm.xlu0 %397, %v380
        %v399 = vpop.permute.xlu0 %398
        %v405 = vunpack.c.l.b16 %v371
        %v406 = vunpack.c.l.b16 %v372
        %v407 = vunpack.c.l.b16 %v373
        %v408 = vunpack.c.l.b16 %v374
        %v409 = vpack.c.b16 %v406, %v405
        %v410 = vpack.c.b16 %v408, %v407
        %v412 = vsel %vm311, %v409, 0
        %v415 = vsel %vm311, %v410, 0
        %417 = vmatprep.subr.bf16.mxu0 0
        %418 = vmatpush1.bf16.msra.mxu0 0
        %419 = vmatprep.subr.bf16.mxu0 0
        %420 = vmatpush1.bf16.msra.mxu0 0
        %421 = vmatprep.subr.bf16.mxu0 0
        %422 = vmatpush1.bf16.msra.mxu0 0
        %423 = vmatprep.subr.bf16.mxu0 0
        %424 = vmatpush1.bf16.msra.mxu0 0
        %425 = vmatprep.subr.bf16.mxu0 0
        %426 = vmatpush1.bf16.msra.mxu0 0
        %427 = vmatprep.subr.bf16.mxu0 0
        %428 = vmatpush1.bf16.msra.mxu0 0
        %429 = vmatprep.subr.bf16.mxu0 0
        %430 = vmatpush1.bf16.msra.mxu0 %v376
        %431 = vmatprep.subr.bf16.mxu0 0
        %432 = vmatpush1.bf16.msra.mxu0 %v375
        %433 = vmatprep.subr.bf16.mxu0 0
        %434 = vmatpush2.bf16.msra.mxu0 0
        %435 = vmatprep.subr.bf16.mxu0 0
        %436 = vmatpush2.bf16.msra.mxu0 0
        %437 = vmatprep.subr.bf16.mxu0 0
        %438 = vmatpush2.bf16.msra.mxu0 0
        %439 = vmatprep.subr.bf16.mxu0 0
        %440 = vmatpush2.bf16.msra.mxu0 0
        %441 = vmatprep.subr.bf16.mxu0 0
        %442 = vmatpush2.bf16.msra.mxu0 0
        %443 = vmatprep.subr.bf16.mxu0 0
        %444 = vmatpush2.bf16.msra.mxu0 0
        %445 = vmatprep.subr.bf16.mxu0 0
        %446 = vmatpush2.bf16.msra.mxu0 0
        %447 = vmatprep.subr.bf16.mxu0 0
        %448 = vmatpush2.bf16.msra.mxu0 0
        %449 = vmatprep.mubr.bf16.mxu0 0
        %450 = vmatmul.mubr.bf16.gmra.mxu0 %v412
        %v451 = vpop.f32.mrf.mxu0
        %v452 = vadd.f32 %v384, %v451
        %v453 = vpop.f32.mrf.mxu0
        %v454 = vpop.f32.mrf.mxu0
        %v455 = vadd.f32 %v389, %v454
        %v456 = vpop.f32.mrf.mxu0
        %457 = vmatprep.mubr.bf16.mxu0 0
        %458 = vmatmul.mubr.bf16.gmra.mxu0 %v415
        %v459 = vpop.f32.mrf.mxu0
        %v460 = vadd.f32 %v394, %v459
        %v461 = vpop.f32.mrf.mxu0
        %v462 = vpop.f32.mrf.mxu0
        %v463 = vadd.f32 %v399, %v462
        %v464 = vpop.f32.mrf.mxu0
        %465 = vdwg.mxu0
        %v466 = vadd.f32 %v452, %v267
        %v467 = vadd.f32 %v455, %v268
        %v468 = vadd.f32 %v460, %v269
        %v469 = vadd.f32 %v463, %v270
        %v470 = vmax.f32 %v466, 0.0
        %v471 = vmax.f32 %v467, 0.0
        %v472 = vmax.f32 %v468, 0.0
        %v473 = vmax.f32 %v469, 0.0
        %s474 = scalar_lea.vmem %s1, 16
        %v475 = vld [vmem:[%s474] sm:$0xf]
        %v476 = vld [vmem:[%s474 + $0x4] sm:$0xf]
        %v477 = vld [vmem:[%s474 + $0x8] sm:$0xf]
        %v478 = vld [vmem:[%s474 + $0xc] sm:$0xf]
        %v479 = vpack.c.bf16 %v471, %v470
        %v480 = vpack.c.bf16 %v473, %v472
        %s481 = scalar_lea.vmem %s2, 32
        %v482 = vld [vmem:[%s481] sm:$0xff]
        %v483 = vld [vmem:[%s481 + $0x8] sm:$0xff]
        %v484 = vld [vmem:[%s481 + $0x10] sm:$0xff]
        %v485 = vld [vmem:[%s481 + $0x18] sm:$0xff]
        %487 = vset.pattern.permute.xlu0 0
        %488 = vperm.xlu0 %487, %v482
        %v489 = vpop.permute.xlu0 %488
        %492 = vset.pattern.permute.xlu0 0
        %493 = vperm.xlu0 %492, %v483
        %v494 = vpop.permute.xlu0 %493
        %497 = vset.pattern.permute.xlu0 0
        %498 = vperm.xlu0 %497, %v484
        %v499 = vpop.permute.xlu0 %498
        %502 = vset.pattern.permute.xlu0 0
        %503 = vperm.xlu0 %502, %v485
        %v504 = vpop.permute.xlu0 %503
        %v510 = vunpack.c.l.b16 %v475
        %v511 = vunpack.c.l.b16 %v476
        %v512 = vunpack.c.l.b16 %v477
        %v513 = vunpack.c.l.b16 %v478
        %v514 = vpack.c.b16 %v511, %v510
        %v515 = vpack.c.b16 %v513, %v512
        %v517 = vsel %vm311, %v514, 0
        %v520 = vsel %vm311, %v515, 0
        %522 = vmatprep.subr.bf16.mxu0 0
        %523 = vmatpush1.bf16.msra.mxu0 0
        %524 = vmatprep.subr.bf16.mxu0 0
        %525 = vmatpush1.bf16.msra.mxu0 0
        %526 = vmatprep.subr.bf16.mxu0 0
        %527 = vmatpush1.bf16.msra.mxu0 0
        %528 = vmatprep.subr.bf16.mxu0 0
        %529 = vmatpush1.bf16.msra.mxu0 0
        %530 = vmatprep.subr.bf16.mxu0 0
        %531 = vmatpush1.bf16.msra.mxu0 0
        %532 = vmatprep.subr.bf16.mxu0 0
        %533 = vmatpush1.bf16.msra.mxu0 0
        %534 = vmatprep.subr.bf16.mxu0 0
        %535 = vmatpush1.bf16.msra.mxu0 %v480
        %536 = vmatprep.subr.bf16.mxu0 0
        %537 = vmatpush1.bf16.msra.mxu0 %v479
        %538 = vmatprep.subr.bf16.mxu0 0
        %539 = vmatpush2.bf16.msra.mxu0 0
        %540 = vmatprep.subr.bf16.mxu0 0
        %541 = vmatpush2.bf16.msra.mxu0 0
        %542 = vmatprep.subr.bf16.mxu0 0
        %543 = vmatpush2.bf16.msra.mxu0 0
        %544 = vmatprep.subr.bf16.mxu0 0
        %545 = vmatpush2.bf16.msra.mxu0 0
        %546 = vmatprep.subr.bf16.mxu0 0
        %547 = vmatpush2.bf16.msra.mxu0 0
        %548 = vmatprep.subr.bf16.mxu0 0
        %549 = vmatpush2.bf16.msra.mxu0 0
        %550 = vmatprep.subr.bf16.mxu0 0
        %551 = vmatpush2.bf16.msra.mxu0 0
        %552 = vmatprep.subr.bf16.mxu0 0
        %553 = vmatpush2.bf16.msra.mxu0 0
        %554 = vmatprep.mubr.bf16.mxu0 0
        %555 = vmatmul.mubr.bf16.gmra.mxu0 %v517
        %v556 = vpop.f32.mrf.mxu0
        %v557 = vadd.f32 %v489, %v556
        %v558 = vpop.f32.mrf.mxu0
        %v559 = vpop.f32.mrf.mxu0
        %v560 = vadd.f32 %v494, %v559
        %v561 = vpop.f32.mrf.mxu0
        %562 = vmatprep.mubr.bf16.mxu0 0
        %563 = vmatmul.mubr.bf16.gmra.mxu0 %v520
        %v564 = vpop.f32.mrf.mxu0
        %v565 = vadd.f32 %v499, %v564
        %v566 = vpop.f32.mrf.mxu0
        %v567 = vpop.f32.mrf.mxu0
        %v568 = vadd.f32 %v504, %v567
        %v569 = vpop.f32.mrf.mxu0
        %570 = vdwg.mxu0
        %v571 = vmax.f32 %v557, 0.0
        %v572 = vmax.f32 %v560, 0.0
        %v573 = vmax.f32 %v565, 0.0
        %v574 = vmax.f32 %v568, 0.0
        %s575 = scalar_lea.vmem %s3, 16
        %v576 = vld [vmem:[%s575] sm:$0xf]
        %v577 = vld [vmem:[%s575 + $0x4] sm:$0xf]
        %v578 = vld [vmem:[%s575 + $0x8] sm:$0xf]
        %v579 = vld [vmem:[%s575 + $0xc] sm:$0xf]
        %v580 = vpack.c.bf16 %v572, %v571
        %v581 = vpack.c.bf16 %v574, %v573
        %s582 = scalar_lea.vmem %s4, 32
        %v583 = vld [vmem:[%s582] sm:$0xff]
        %v584 = vld [vmem:[%s582 + $0x8] sm:$0xff]
        %v585 = vld [vmem:[%s582 + $0x10] sm:$0xff]
        %v586 = vld [vmem:[%s582 + $0x18] sm:$0xff]
        %588 = vset.pattern.permute.xlu0 0
        %589 = vperm.xlu0 %588, %v583
        %v590 = vpop.permute.xlu0 %589
        %593 = vset.pattern.permute.xlu0 0
        %594 = vperm.xlu0 %593, %v584
        %v595 = vpop.permute.xlu0 %594
        %598 = vset.pattern.permute.xlu0 0
        %599 = vperm.xlu0 %598, %v585
        %v600 = vpop.permute.xlu0 %599
        %603 = vset.pattern.permute.xlu0 0
        %604 = vperm.xlu0 %603, %v586
        %v605 = vpop.permute.xlu0 %604
        %v611 = vunpack.c.l.b16 %v576
        %v612 = vunpack.c.l.b16 %v577
        %v613 = vunpack.c.l.b16 %v578
        %v614 = vunpack.c.l.b16 %v579
        %v615 = vpack.c.b16 %v612, %v611
        %v616 = vpack.c.b16 %v614, %v613
        %v618 = vsel %vm311, %v615, 0
        %v621 = vsel %vm311, %v616, 0
        %623 = vmatprep.subr.bf16.mxu0 0
        %624 = vmatpush1.bf16.msra.mxu0 0
        %625 = vmatprep.subr.bf16.mxu0 0
        %626 = vmatpush1.bf16.msra.mxu0 0
        %627 = vmatprep.subr.bf16.mxu0 0
        %628 = vmatpush1.bf16.msra.mxu0 0
        %629 = vmatprep.subr.bf16.mxu0 0
        %630 = vmatpush1.bf16.msra.mxu0 0
        %631 = vmatprep.subr.bf16.mxu0 0
        %632 = vmatpush1.bf16.msra.mxu0 0
        %633 = vmatprep.subr.bf16.mxu0 0
        %634 = vmatpush1.bf16.msra.mxu0 0
        %635 = vmatprep.subr.bf16.mxu0 0
        %636 = vmatpush1.bf16.msra.mxu0 %v581
        %637 = vmatprep.subr.bf16.mxu0 0
        %638 = vmatpush1.bf16.msra.mxu0 %v580
        %639 = vmatprep.subr.bf16.mxu0 0
        %640 = vmatpush2.bf16.msra.mxu0 0
        %641 = vmatprep.subr.bf16.mxu0 0
        %642 = vmatpush2.bf16.msra.mxu0 0
        %643 = vmatprep.subr.bf16.mxu0 0
        %644 = vmatpush2.bf16.msra.mxu0 0
        %645 = vmatprep.subr.bf16.mxu0 0
        %646 = vmatpush2.bf16.msra.mxu0 0
        %647 = vmatprep.subr.bf16.mxu0 0
        %648 = vmatpush2.bf16.msra.mxu0 0
        %649 = vmatprep.subr.bf16.mxu0 0
        %650 = vmatpush2.bf16.msra.mxu0 0
        %651 = vmatprep.subr.bf16.mxu0 0
        %652 = vmatpush2.bf16.msra.mxu0 0
        %653 = vmatprep.subr.bf16.mxu0 0
        %654 = vmatpush2.bf16.msra.mxu0 0
        %655 = vmatprep.mubr.bf16.mxu0 0
        %656 = vmatmul.mubr.bf16.gmra.mxu0 %v618
        %v657 = vpop.f32.mrf.mxu0
        %v658 = vadd.f32 %v590, %v657
        %v659 = vpop.f32.mrf.mxu0
        %v660 = vpop.f32.mrf.mxu0
        %v661 = vadd.f32 %v595, %v660
        %v662 = vpop.f32.mrf.mxu0
        %663 = vmatprep.mubr.bf16.mxu0 0
        %664 = vmatmul.mubr.bf16.gmra.mxu0 %v621
        %v665 = vpop.f32.mrf.mxu0
        %v666 = vadd.f32 %v600, %v665
        %v667 = vpop.f32.mrf.mxu0
        %v668 = vpop.f32.mrf.mxu0
        %v669 = vadd.f32 %v605, %v668
        %v670 = vpop.f32.mrf.mxu0
        %671 = vdwg.mxu0
        %v672 = vadd.f32 %v658, %v470
        %v673 = vadd.f32 %v661, %v471
        %v674 = vadd.f32 %v666, %v472
        %v675 = vadd.f32 %v669, %v473
        %v676 = vmax.f32 %v672, 0.0
        %v677 = vmax.f32 %v673, 0.0
        %v678 = vmax.f32 %v674, 0.0
        %v679 = vmax.f32 %v675, 0.0
        %680 = vst [vmem:[%s265] sm:$0xff] %v676
        %681 = vst [vmem:[%s265 + $0x8] sm:$0xff] %v677
        %682 = vst [vmem:[%s265 + $0x10] sm:$0xff] %v678
        %683 = vst [vmem:[%s265 + $0x18] sm:$0xff] %v679
        %s684 = sand.u32 %s134, 1
        %s685 = sand.u32 %s134, 1
        %s686 = smul.addr %s685, 32
        %s687 = scalar_lea.vmem [#allocation3], %s686
        // Predicated region
        $region79: #{pos_extraction.1} parent=73 // pred_check
          %p688 = pneg %p144
        $region80: #{pos_extraction.1} parent=73 // pred_check_branch
          %690 = sbr.rel (%p688) target = $region82
        $region81: #{pos_extraction.1} parent=73 // pred_region
          %s691 = smul.addr %s16, 8
          %s692 = scalar_lea.vmem %s5, %s691
          // Predicated region
          $region83: #{pos_extraction.1} parent=81 // pred_check
            _
          $region84: #{pos_extraction.1} parent=81 // pred_check_branch
            %694 = sbr.rel (0) target = $region86
          $region85: #{pos_extraction.1} parent=81 // pred_region
            // Predicated region
            $region87: #{pos_extraction.1} parent=85 // pred_check
              _
            $region88: #{pos_extraction.1} parent=85 // pred_check_branch
              %696 = sbr.rel (0) target = $region90
            $region89: #{pos_extraction.1} parent=85 // pred_region
              // Predicated region
              $region102: #{pos_extraction.1} parent=89 // pred_check
                _
              $region103: #{pos_extraction.1} parent=89 // pred_check_branch
                %718 = sbr.rel (0) target = $region105
              $region104: #{pos_extraction.1} parent=89 // pred_region
                loop: start=0, step=1, limit=1
                $region106: #{pos_extraction.1} parent=104 // loop_pre_header
                  _
                $region107: #{pos_extraction.1} parent=104 // loop_header
                  %s720 = sphi 0, %s724
                  %p721 = scmp.ge.s32.totalorder %s720, 1
                  %s725 = sphi %s687, %s687
                  %s726 = sphi %s692, %s692
                $region108: #{pos_extraction.1} parent=104 // loop_header_branch
                  %723 = sbr.rel (%p721) target = $region112
                $region109: #{pos_extraction.1} parent=104 // loop_body
                  %v727 = vld [vmem:[%s725] sm:$0xff]
                  %728 = vst [vmem:[%s726] sm:$0xff] %v727
                  %v729 = vld [vmem:[%s725 + $0x8] sm:$0xff]
                  %730 = vst [vmem:[%s726 + $0x10] sm:$0xff] %v729
                  %v731 = vld [vmem:[%s725 + $0x10] sm:$0xff]
                  %732 = vst [vmem:[%s726 + $0x20] sm:$0xff] %v731
                  %v733 = vld [vmem:[%s725 + $0x18] sm:$0xff]
                  %734 = vst [vmem:[%s726 + $0x30] sm:$0xff] %v733
                $region110: #{pos_extraction.1} parent=104 // loop_footer
                  %s724 = sadd.s32 1, %s720
                $region111: #{pos_extraction.1} parent=104 // loop_footer_branch
                  %719 = sbr.rel target = $region107
                $region112: #{pos_extraction.1} parent=104 // loop_exit
                  _
              $region105: #{pos_extraction.1} parent=89 // pred_fallthru
                _
              // Predicated region
              $region113: #{pos_extraction.1} parent=89 // pred_check
                _
              $region114: #{pos_extraction.1} parent=89 // pred_check_branch
                %736 = sbr.rel target = $region116
              $region115: #{pos_extraction.1} parent=89 // pred_region
                _
              $region116: #{pos_extraction.1} parent=89 // pred_fallthru
                _
            $region90: #{pos_extraction.1} parent=85 // pred_fallthru
              _
            // Predicated region
            $region91: #{pos_extraction.1} parent=85 // pred_check
              _
            $region92: #{pos_extraction.1} parent=85 // pred_check_branch
              %698 = sbr.rel target = $region94
            $region93: #{pos_extraction.1} parent=85 // pred_region
              %s700 = ssub.s32 256, 1
              loop: start=0, step=1, limit=1
              $region95: #{pos_extraction.1} parent=93 // loop_pre_header
                _
              $region96: #{pos_extraction.1} parent=93 // loop_header
                %s702 = sphi 0, %s706
                %p703 = scmp.ge.s32.totalorder %s702, 1
                %s707 = sphi %s687, %s687
                %s708 = sphi %s692, %s692
              $region97: #{pos_extraction.1} parent=93 // loop_header_branch
                %705 = sbr.rel (%p703) target = $region101
              $region98: #{pos_extraction.1} parent=93 // loop_body
                %v709 = vld [vmem:[%s707] sm:%s700]
                %710 = vst [vmem:[%s708] sm:%s700] %v709
                %v711 = vld [vmem:[%s707 + $0x8] sm:%s700]
                %712 = vst [vmem:[%s708 + $0x10] sm:%s700] %v711
                %v713 = vld [vmem:[%s707 + $0x10] sm:%s700]
                %714 = vst [vmem:[%s708 + $0x20] sm:%s700] %v713
                %v715 = vld [vmem:[%s707 + $0x18] sm:%s700]
                %716 = vst [vmem:[%s708 + $0x30] sm:%s700] %v715
              $region99: #{pos_extraction.1} parent=93 // loop_footer
                %s706 = sadd.s32 1, %s702
              $region100: #{pos_extraction.1} parent=93 // loop_footer_branch
                %701 = sbr.rel target = $region96
              $region101: #{pos_extraction.1} parent=93 // loop_exit
                _
            $region94: #{pos_extraction.1} parent=85 // pred_fallthru
              _
          $region86: #{pos_extraction.1} parent=81 // pred_fallthru
            _
          %737 = vnop
        $region82: #{pos_extraction.1} parent=73 // pred_fallthru
          _
      $region74: #{pos_extraction.1} parent=5 // pred_fallthru
        _
      %p738 = scmp.le.s32.totalorder 2, %s11
      // Predicated region
      $region117: #{pos_extraction.1} parent=5 // pred_check
        %p739 = pneg %p738
      $region118: #{pos_extraction.1} parent=5 // pred_check_branch
        %741 = sbr.rel (%p739) target = $region120
      $region119: #{pos_extraction.1} parent=5 // pred_region
        %s742 = ssub.s32 %s11, 2
        // Predicated region
        $region121: #{pos_extraction.1} parent=119 // pred_check
          %p743 = pneg %p150
        $region122: #{pos_extraction.1} parent=119 // pred_check_branch
          %745 = sbr.rel (%p743) target = $region124
        $region123: #{pos_extraction.1} parent=119 // pred_region
          %s746 = sand.u32 %s135, 1
          %s747 = sand.u32 %s135, 1
          %s748 = smul.addr %s747, 32
          %s749 = scalar_lea.vmem [#allocation3], %s748
        $region124: #{pos_extraction.1} parent=119 // pred_fallthru
          _
      $region120: #{pos_extraction.1} parent=5 // pred_fallthru
        _
    $region6: #{pos_extraction.1} parent=1 // loop_footer
      %s15 = sadd.s32 1, %s11
    $region7: #{pos_extraction.1} parent=1 // loop_footer_branch
      %10 = sbr.rel target = $region3
    $region8: #{pos_extraction.1} parent=1 // loop_exit
      _

</llo_original>
